<compile_context>
chip_gen: v5e
topology: v5e:2x2
jax: 0.10.0
libtpu: 0.0.40
codegen_flags: <defaults>
</compile_context>

<pallas_src>
import functools
import math

import jax
import jax.numpy as jnp
from jax.experimental import pallas as pl
from jax.experimental.pallas import tpu as pltpu

PHASE_BINS = 64          # lookup_tables.N (power of two, multiple of 4)
MAG_BINS = 1024          # lookup_tables.M (power of two)
MAG_LO = -3.0            # exp-spaced magnitude LUT range
MAG_HI = 3.0
REFRACTORY_FACTOR = 0.3
ACTIVATION_THRESHOLD = 0.1


def _round_up(x, m):
    return -(-x // m) * m


def _cos_sin_of_phase(p_idx, phase_bins):
    """cos/sin of 2*pi*p/N for integer p in [0, N) via quadrant reduction and
    short Horner polynomials (pure VPU mul/add; no table, no gather)."""
    quarter = phase_bins // 4
    shift = quarter.bit_length() - 1
    q = p_idx >> shift                              # quadrant 0..3
    r = p_idx & (quarter - 1)                       # 0..quarter-1
    phi = r.astype(jnp.float32) * (2.0 * math.pi / phase_bins)   # [0, pi/2)
    z = phi * phi
    c2, c4, c6, c8, c10, c12 = (-1.0 / 2, 1.0 / 24, -1.0 / 720, 1.0 / 40320,
                                -1.0 / 3628800, 1.0 / 479001600)
    s3, s5, s7, s9, s11 = (-1.0 / 6, 1.0 / 120, -1.0 / 5040, 1.0 / 362880,
                           -1.0 / 39916800)
    cos_phi = 1.0 + z * (c2 + z * (c4 + z * (c6 + z * (c8 + z * (c10 + z * c12)))))
    sin_phi = phi * (1.0 + z * (s3 + z * (s5 + z * (s7 + z * (s9 + z * s11)))))
    q1, q2, q3 = q == 1, q == 2, q == 3
    cos_v = jnp.where(q1, -sin_phi,
                      jnp.where(q2, -cos_phi, jnp.where(q3, sin_phi, cos_phi)))
    sin_v = jnp.where(q1, cos_phi,
                      jnp.where(q2, -sin_phi, jnp.where(q3, -cos_phi, sin_phi)))
    return cos_v, sin_v


def _bio_phase_cell_kernel(ctx_p_ref, ctx_m_ref, self_p_ref, self_m_ref,
                           fac_ref, p_out_ref, m_out_ref, sig_ref, gp_ref,
                           gm_ref, str_ref, *, vector_dim, groups, phase_bins,
                           mag_bins, saturation_threshold):
    N, M, V, G = phase_bins, mag_bins, vector_dim, groups
    RB, Vp = ctx_p_ref.shape

    # Modular accumulation ((a+b) % bins == (a+b) & (bins-1) for pow2 bins).
    p_out = (ctx_p_ref[...] + self_p_ref[...]) & (N - 1)
    m_out = (ctx_m_ref[...] + self_m_ref[...]) & (M - 1)
    p_out_ref[...] = p_out
    m_out_ref[...] = m_out

    # Phase "lookup": analytic cos/sin (VPU).  Magnitude "lookup": analytic
    # exp-spaced LUT on the EUP.
    cos_v, sin_v = _cos_sin_of_phase(p_out, N)
    mag_step = (MAG_HI - MAG_LO) / (M - 1)
    mag_v = jnp.exp(MAG_LO + m_out.astype(jnp.float32) * mag_step)

    signal_raw = cos_v * mag_v
    gphase_raw = -sin_v * mag_v * (2.0 * math.pi / N)
    gmag_raw = cos_v * (mag_v * mag_step)

    # Biological constraints, per cell (= per V-lane segment of the row).
    abs_sig = jnp.abs(signal_raw)
    lane = jax.lax.broadcasted_iota(jnp.int32, (RB, Vp), 1)
    g_lane = jax.lax.broadcasted_iota(jnp.int32, (RB, G), 1)
    fac_c = fac_ref[...]                                   # [RB, G] refractory factor
    sig_scale = jnp.zeros((RB, Vp), jnp.float32)
    grad_scale = jnp.zeros((RB, Vp), jnp.float32)
    strength_c = jnp.zeros((RB, G), jnp.float32)
    for g in range(G):                                     # static, G <= 128/V
        seg = (lane >= g * V) & (lane < (g + 1) * V)
        s_raw = jnp.sum(jnp.where(seg, abs_sig, 0.0), axis=-1, keepdims=True)
        fac = fac_c[:, g:g + 1]                            # [RB, 1]
        s1 = s_raw * fac                                   # after refractory
        sat = jnp.minimum(1.0, saturation_threshold * pl.reciprocal(s1))
        strength_c = jnp.where(g_lane == g, s1 * sat, strength_c)
        sig_scale = jnp.where(seg, fac * sat, sig_scale)   # signal: refr * sat
        grad_scale = jnp.where(seg, fac, grad_scale)       # grads: refr only

    sig_ref[...] = signal_raw * sig_scale
    gp_ref[...] = gphase_raw * grad_scale
    gm_ref[...] = gmag_raw * grad_scale
    str_ref[...] = strength_c


@functools.partial(
    jax.jit,
    static_argnames=("phase_bins", "mag_bins", "refractory_period",
                     "saturation_threshold"))
def biological_phase_cell_forward(ctx_phase_idx, ctx_mag_idx, self_phase_idx,
                                  self_mag_idx, last_activation,
                                  activation_count,
                                  phase_bins=PHASE_BINS, mag_bins=MAG_BINS,
                                  refractory_period=3,
                                  saturation_threshold=0.8):
    """Batched BiologicalPhaseCell forward for B independent cells.

    Index inputs are [B, vector_dim] ints, per-cell int state is [B].
    Returns (phase_out, mag_out, signal, strength, grad_phase, grad_mag,
             new_last_activation, new_activation_count).
    """
    assert phase_bins % 4 == 0 and phase_bins & (phase_bins - 1) == 0
    assert mag_bins & (mag_bins - 1) == 0
    B, V = ctx_phase_idx.shape

    # Lane-dense packing: G cells of V lanes per 128-lane row when V <= 128.
    if V <= 128:
        G, Vp = 128 // V, 128
    else:
        G, Vp = 1, _round_up(V, 128)
    Bg = _round_up(B, G)
    R = Bg // G                                    # packed rows of real cells
    r8 = _round_up(R, 8)
    row_block = min(512, r8)
    if r8 >= 16:                                   # >=2 grid blocks (v7x megacore)
        row_block = min(row_block, _round_up(pl.cdiv(r8, 2), 8))
    R_pad = _round_up(R, row_block)
    num_blocks = R_pad // row_block

    def pack_idx(x):
        x = x.astype(jnp.int32)
        if V <= 128:
            if Bg != B:
                x = jnp.pad(x, ((0, Bg - B), (0, 0)))
            x = x.reshape(R, G * V)                # free, contiguous reshape
            if G * V != Vp:
                x = jnp.pad(x, ((0, 0), (0, Vp - G * V)))
        elif Vp != V:
            x = jnp.pad(x, ((0, 0), (0, Vp - V)))
        if R_pad != R:
            x = jnp.pad(x, ((0, R_pad - R), (0, 0)))
        return x

    # Per-cell refractory factor: tiny [B]-sized scalar math stays out of the
    # kernel instead of being lane-broadcast into full input rows.
    last = last_activation.astype(jnp.int32)
    cnt = activation_count.astype(jnp.int32)
    refractory = (cnt > 0) & ((cnt - last) < refractory_period)
    factor = jnp.where(refractory, REFRACTORY_FACTOR, 1.0).astype(jnp.float32)
    factor_p = jnp.pad(factor, (0, R_pad * G - B)).reshape(R_pad, G)

    kernel = functools.partial(
        _bio_phase_cell_kernel, vector_dim=V, groups=G, phase_bins=phase_bins,
        mag_bins=mag_bins, saturation_threshold=float(saturation_threshold))

    data_spec = pl.BlockSpec((row_block, Vp), lambda i: (i, 0))
    cell_spec = pl.BlockSpec((row_block, G), lambda i: (i, 0))

    p_o, m_o, sig, g_p, g_m, str_c = pl.pallas_call(
        kernel,
        out_shape=(jax.ShapeDtypeStruct((R_pad, Vp), jnp.int32),    # phase_out
                   jax.ShapeDtypeStruct((R_pad, Vp), jnp.int32),    # mag_out
                   jax.ShapeDtypeStruct((R_pad, Vp), jnp.float32),  # signal
                   jax.ShapeDtypeStruct((R_pad, Vp), jnp.float32),  # grad_phase
                   jax.ShapeDtypeStruct((R_pad, Vp), jnp.float32),  # grad_mag
                   jax.ShapeDtypeStruct((R_pad, G), jnp.float32)),  # strength/cell
        grid=(num_blocks,),
        in_specs=[data_spec, data_spec, data_spec, data_spec, cell_spec],
        out_specs=(data_spec, data_spec, data_spec, data_spec, data_spec,
                   cell_spec),
        compiler_params=pltpu.CompilerParams(
            dimension_semantics=("parallel",),
            vmem_limit_bytes=32 * 1024 * 1024),
    )(pack_idx(ctx_phase_idx), pack_idx(ctx_mag_idx),
      pack_idx(self_phase_idx), pack_idx(self_mag_idx), factor_p)

    def unpack(x):
        if V <= 128:
            return x[:R, :G * V].reshape(Bg, V)[:B]
        return x[:B, :V]

    phase_out, mag_out = unpack(p_o), unpack(m_o)
    signal, grad_phase, grad_mag = unpack(sig), unpack(g_p), unpack(g_m)
    strength = str_c.reshape(-1)[:B]

    # Per-cell state update ([B]-sized; mirrors the torch buffer mutation).
    new_last = jnp.where(strength > ACTIVATION_THRESHOLD, cnt, last)
    new_cnt = cnt + 1
    return (phase_out, mag_out, signal, strength, grad_phase, grad_mag,
            new_last, new_cnt)


def make_lookup_tables(phase_bins=PHASE_BINS, mag_bins=MAG_BINS):
    """Deterministic stand-in for HighResolutionLookupTables (64x1024)."""
    k = jnp.arange(phase_bins, dtype=jnp.float32)
    theta = 2.0 * jnp.pi * k / phase_bins
    cos_t, sin_t = jnp.cos(theta), jnp.sin(theta)
    step = (MAG_HI - MAG_LO) / (mag_bins - 1)
    mag_t = jnp.exp(MAG_LO + jnp.arange(mag_bins, dtype=jnp.float32) * step)
    dmag_t = mag_t * step
    return cos_t, sin_t, mag_t, dmag_t


def _reference_step(ctx_p, ctx_m, self_p, self_m, last_act, act_cnt, tables,
                    refractory_period=3, saturation_threshold=0.8):
    """Pure-JAX, table-based reference of BiologicalPhaseCell.forward."""
    cos_t, sin_t, mag_t, dmag_t = tables
    p_out = (ctx_p + self_p) % PHASE_BINS
    m_out = (ctx_m + self_m) % MAG_BINS
    cos_v, sin_v = cos_t[p_out], sin_t[p_out]
    mag_v, dmag_v = mag_t[m_out], dmag_t[m_out]
    signal = cos_v * mag_v
    grad_phase = -sin_v * mag_v * (2.0 * jnp.pi / PHASE_BINS)
    grad_mag = cos_v * dmag_v
    strength = jnp.sum(jnp.abs(signal), axis=-1)

    refractory = (act_cnt > 0) & ((act_cnt - last_act) < refractory_period)
    factor = jnp.where(refractory, REFRACTORY_FACTOR, 1.0)
    signal = signal * factor[:, None]
    strength = strength * factor
    grad_phase = grad_phase * factor[:, None]
    grad_mag = grad_mag * factor[:, None]

    saturated = strength > saturation_threshold
    sat = jnp.where(saturated,
                    saturation_threshold / jnp.where(saturated, strength, 1.0),
                    1.0)
    signal = signal * sat[:, None]
    strength = strength * sat

    new_last = jnp.where(strength > ACTIVATION_THRESHOLD, act_cnt, last_act)
    new_cnt = act_cnt + 1
    return (p_out, m_out, signal, strength, grad_phase, grad_mag,
            new_last, new_cnt)


if __name__ == "__main__":
    num_cells = 8        # batch of independent cells
    vector_dim = 32

    tables = make_lookup_tables()

    last_act_k = jnp.zeros((num_cells,), jnp.int32)
    act_cnt_k = jnp.zeros((num_cells,), jnp.int32)
    last_act_r = jnp.zeros((num_cells,), jnp.int32)
    act_cnt_r = jnp.zeros((num_cells,), jnp.int32)

    key = jax.random.PRNGKey(0)
    for step in range(3):    # sequential steps exercise the refractory path
        key, k1, k2, k3, k4 = jax.random.split(key, 5)
        ctx_p = jax.random.randint(k1, (num_cells, vector_dim), 0, PHASE_BINS,
                                   dtype=jnp.int32)
        ctx_m = jax.random.randint(k2, (num_cells, vector_dim), 0, MAG_BINS,
                                   dtype=jnp.int32)
        self_p = jax.random.randint(k3, (num_cells, vector_dim), 0, PHASE_BINS,
                                    dtype=jnp.int32)
        self_m = jax.random.randint(k4, (num_cells, vector_dim), 0, MAG_BINS,
                                    dtype=jnp.int32)

        outs = biological_phase_cell_forward(
            ctx_p, ctx_m, self_p, self_m, last_act_k, act_cnt_k)
        outs = jax.block_until_ready(outs)
        refs = _reference_step(
            ctx_p, ctx_m, self_p, self_m, last_act_r, act_cnt_r, tables)

        (p_o, m_o, sig, stg, g_p, g_m, last_act_k, act_cnt_k) = outs
        (p_r, m_r, sig_r, stg_r, g_pr, g_mr, last_act_r, act_cnt_r) = refs

        assert jnp.array_equal(p_o, p_r)
        assert jnp.array_equal(m_o, m_r)
        # Analytic in-kernel cos/sin vs the f32 LUT reference: |signal| can be
        # ~20, so allow ~1e-4 absolute slack (~5e-6 relative).
        assert jnp.allclose(sig, sig_r, rtol=1e-5, atol=1e-4)
        assert jnp.allclose(stg, stg_r, rtol=1e-4, atol=1e-3)
        assert jnp.allclose(g_p, g_pr, rtol=1e-5, atol=1e-4)
        assert jnp.allclose(g_m, g_mr, rtol=1e-5, atol=1e-5)
        assert jnp.array_equal(last_act_k, last_act_r)
        assert jnp.array_equal(act_cnt_k, act_cnt_r)

    print("KERNEL_OK")
</pallas_src>

<mosaic_0001>
module attributes {stable_mosaic.version = 11 : i64} {
  func.func @_bio_phase_cell_kernel(%arg0: i32, %arg1: memref<8x128xi32, #tpu.memory_space<vmem>>, %arg2: memref<8x128xi32, #tpu.memory_space<vmem>>, %arg3: memref<8x128xi32, #tpu.memory_space<vmem>>, %arg4: memref<8x128xi32, #tpu.memory_space<vmem>>, %arg5: memref<8x4xf32, #tpu.memory_space<vmem>>, %arg6: memref<8x128xi32, #tpu.memory_space<vmem>>, %arg7: memref<8x128xi32, #tpu.memory_space<vmem>>, %arg8: memref<8x128xf32, #tpu.memory_space<vmem>>, %arg9: memref<8x128xf32, #tpu.memory_space<vmem>>, %arg10: memref<8x128xf32, #tpu.memory_space<vmem>>, %arg11: memref<8x4xf32, #tpu.memory_space<vmem>>) attributes {dimension_semantics = [#tpu.dimension_semantics<parallel>], iteration_bounds = array<i64: 1>, scalar_prefetch = 0 : i64, scratch_operands = 0 : i64, tpu.core_type = #tpu.core_type<tc>, window_params = [{transform_indices = @transform_0, window_bounds = array<i64: 8, 128>}, {transform_indices = @transform_1, window_bounds = array<i64: 8, 128>}, {transform_indices = @transform_2, window_bounds = array<i64: 8, 128>}, {transform_indices = @transform_3, window_bounds = array<i64: 8, 128>}, {transform_indices = @transform_4, window_bounds = array<i64: 8, 4>}, {transform_indices = @transform_5, window_bounds = array<i64: 8, 128>}, {transform_indices = @transform_6, window_bounds = array<i64: 8, 128>}, {transform_indices = @transform_7, window_bounds = array<i64: 8, 128>}, {transform_indices = @transform_8, window_bounds = array<i64: 8, 128>}, {transform_indices = @transform_9, window_bounds = array<i64: 8, 128>}, {transform_indices = @transform_10, window_bounds = array<i64: 8, 4>}]} {
    %c0 = arith.constant 0 : index
    %c0_0 = arith.constant 0 : index
    %0 = vector.load %arg1[%c0, %c0_0] : memref<8x128xi32, #tpu.memory_space<vmem>>, vector<8x128xi32>
    %c0_1 = arith.constant 0 : index
    %c0_2 = arith.constant 0 : index
    %1 = vector.load %arg3[%c0_1, %c0_2] : memref<8x128xi32, #tpu.memory_space<vmem>>, vector<8x128xi32>
    %2 = arith.addi %0, %1 : vector<8x128xi32>
    %c63_i32 = arith.constant 63 : i32
    %3 = vector.broadcast %c63_i32 : i32 to vector<8x128xi32>
    %4 = arith.andi %2, %3 : vector<8x128xi32>
    %c0_3 = arith.constant 0 : index
    %c0_4 = arith.constant 0 : index
    %5 = vector.load %arg2[%c0_3, %c0_4] : memref<8x128xi32, #tpu.memory_space<vmem>>, vector<8x128xi32>
    %c0_5 = arith.constant 0 : index
    %c0_6 = arith.constant 0 : index
    %6 = vector.load %arg4[%c0_5, %c0_6] : memref<8x128xi32, #tpu.memory_space<vmem>>, vector<8x128xi32>
    %7 = arith.addi %5, %6 : vector<8x128xi32>
    %c1023_i32 = arith.constant 1023 : i32
    %8 = vector.broadcast %c1023_i32 : i32 to vector<8x128xi32>
    %9 = arith.andi %7, %8 : vector<8x128xi32>
    %c0_7 = arith.constant 0 : index
    %c0_8 = arith.constant 0 : index
    %10 = vector.load %arg6[%c0_7, %c0_8] : memref<8x128xi32, #tpu.memory_space<vmem>>, vector<8x128xi32>
    tpu.vector_store %arg6[%c0_7, %c0_8], %4 {strides = array<i32>} : memref<8x128xi32, #tpu.memory_space<vmem>>, vector<8x128xi32>,
    %c0_9 = arith.constant 0 : index
    %c0_10 = arith.constant 0 : index
    %11 = vector.load %arg7[%c0_9, %c0_10] : memref<8x128xi32, #tpu.memory_space<vmem>>, vector<8x128xi32>
    tpu.vector_store %arg7[%c0_9, %c0_10], %9 {strides = array<i32>} : memref<8x128xi32, #tpu.memory_space<vmem>>, vector<8x128xi32>,
    %c4_i32 = arith.constant 4 : i32
    %12 = vector.broadcast %c4_i32 : i32 to vector<8x128xi32>
    %13 = arith.shrsi %4, %12 : vector<8x128xi32>
    %c15_i32 = arith.constant 15 : i32
    %14 = vector.broadcast %c15_i32 : i32 to vector<8x128xi32>
    %15 = arith.andi %4, %14 : vector<8x128xi32>
    %16 = arith.sitofp %15 : vector<8x128xi32> to vector<8x128xf32>
    %cst = arith.constant 0.0981747731 : f32
    %17 = vector.broadcast %cst : f32 to vector<8x128xf32>
    %18 = arith.mulf %16, %17 : vector<8x128xf32>
    %19 = arith.mulf %18, %18 : vector<8x128xf32>
    %cst_11 = arith.constant 2.08767559E-9 : f32
    %20 = vector.broadcast %cst_11 : f32 to vector<8x128xf32>
    %21 = arith.mulf %19, %20 : vector<8x128xf32>
    %cst_12 = arith.constant -2.755732E-7 : f32
    %22 = vector.broadcast %cst_12 : f32 to vector<8x128xf32>
    %23 = arith.addf %22, %21 : vector<8x128xf32>
    %24 = arith.mulf %19, %23 : vector<8x128xf32>
    %cst_13 = arith.constant 2.48015876E-5 : f32
    %25 = vector.broadcast %cst_13 : f32 to vector<8x128xf32>
    %26 = arith.addf %25, %24 : vector<8x128xf32>
    %27 = arith.mulf %19, %26 : vector<8x128xf32>
    %cst_14 = arith.constant -0.00138888892 : f32
    %28 = vector.broadcast %cst_14 : f32 to vector<8x128xf32>
    %29 = arith.addf %28, %27 : vector<8x128xf32>
    %30 = arith.mulf %19, %29 : vector<8x128xf32>
    %cst_15 = arith.constant 0.0416666679 : f32
    %31 = vector.broadcast %cst_15 : f32 to vector<8x128xf32>
    %32 = arith.addf %31, %30 : vector<8x128xf32>
    %33 = arith.mulf %19, %32 : vector<8x128xf32>
    %cst_16 = arith.constant -5.000000e-01 : f32
    %34 = vector.broadcast %cst_16 : f32 to vector<8x128xf32>
    %35 = arith.addf %34, %33 : vector<8x128xf32>
    %36 = arith.mulf %19, %35 : vector<8x128xf32>
    %cst_17 = arith.constant 1.000000e+00 : f32
    %37 = vector.broadcast %cst_17 : f32 to vector<8x128xf32>
    %38 = arith.addf %37, %36 : vector<8x128xf32>
    %cst_18 = arith.constant -2.50521079E-8 : f32
    %39 = vector.broadcast %cst_18 : f32 to vector<8x128xf32>
    %40 = arith.mulf %19, %39 : vector<8x128xf32>
    %cst_19 = arith.constant 2.75573188E-6 : f32
    %41 = vector.broadcast %cst_19 : f32 to vector<8x128xf32>
    %42 = arith.addf %41, %40 : vector<8x128xf32>
    %43 = arith.mulf %19, %42 : vector<8x128xf32>
    %cst_20 = arith.constant -1.98412701E-4 : f32
    %44 = vector.broadcast %cst_20 : f32 to vector<8x128xf32>
    %45 = arith.addf %44, %43 : vector<8x128xf32>
    %46 = arith.mulf %19, %45 : vector<8x128xf32>
    %cst_21 = arith.constant 0.00833333377 : f32
    %47 = vector.broadcast %cst_21 : f32 to vector<8x128xf32>
    %48 = arith.addf %47, %46 : vector<8x128xf32>
    %49 = arith.mulf %19, %48 : vector<8x128xf32>
    %cst_22 = arith.constant -0.166666672 : f32
    %50 = vector.broadcast %cst_22 : f32 to vector<8x128xf32>
    %51 = arith.addf %50, %49 : vector<8x128xf32>
    %52 = arith.mulf %19, %51 : vector<8x128xf32>
    %cst_23 = arith.constant 1.000000e+00 : f32
    %53 = vector.broadcast %cst_23 : f32 to vector<8x128xf32>
    %54 = arith.addf %53, %52 : vector<8x128xf32>
    %55 = arith.mulf %18, %54 : vector<8x128xf32>
    %c1_i32 = arith.constant 1 : i32
    %56 = vector.broadcast %c1_i32 : i32 to vector<8x128xi32>
    %57 = arith.cmpi eq, %13, %56 : vector<8x128xi32>
    %c2_i32 = arith.constant 2 : i32
    %58 = vector.broadcast %c2_i32 : i32 to vector<8x128xi32>
    %59 = arith.cmpi eq, %13, %58 : vector<8x128xi32>
    %c3_i32 = arith.constant 3 : i32
    %60 = vector.broadcast %c3_i32 : i32 to vector<8x128xi32>
    %61 = arith.cmpi eq, %13, %60 : vector<8x128xi32>
    %cst_24 = arith.constant 0.000000e+00 : f32
    %62 = vector.broadcast %cst_24 : f32 to vector<8x128xf32>
    %63 = arith.subf %62, %55 : vector<8x128xf32>
    %cst_25 = arith.constant 0.000000e+00 : f32
    %64 = vector.broadcast %cst_25 : f32 to vector<8x128xf32>
    %65 = arith.subf %64, %38 : vector<8x128xf32>
    %66 = arith.select %61, %55, %38 : vector<8x128xi1>, vector<8x128xf32>
    %67 = arith.select %59, %65, %66 : vector<8x128xi1>, vector<8x128xf32>
    %68 = arith.select %57, %63, %67 : vector<8x128xi1>, vector<8x128xf32>
    %cst_26 = arith.constant 0.000000e+00 : f32
    %69 = vector.broadcast %cst_26 : f32 to vector<8x128xf32>
    %70 = arith.subf %69, %55 : vector<8x128xf32>
    %cst_27 = arith.constant 0.000000e+00 : f32
    %71 = vector.broadcast %cst_27 : f32 to vector<8x128xf32>
    %72 = arith.subf %71, %38 : vector<8x128xf32>
    %73 = arith.select %61, %72, %55 : vector<8x128xi1>, vector<8x128xf32>
    %74 = arith.select %59, %70, %73 : vector<8x128xi1>, vector<8x128xf32>
    %75 = arith.select %57, %38, %74 : vector<8x128xi1>, vector<8x128xf32>
    %76 = arith.sitofp %9 : vector<8x128xi32> to vector<8x128xf32>
    %cst_28 = arith.constant 0.00586510263 : f32
    %77 = vector.broadcast %cst_28 : f32 to vector<8x128xf32>
    %78 = arith.mulf %76, %77 : vector<8x128xf32>
    %cst_29 = arith.constant -3.000000e+00 : f32
    %79 = vector.broadcast %cst_29 : f32 to vector<8x128xf32>
    %80 = arith.addf %79, %78 : vector<8x128xf32>
    %81 = math.exp %80 : vector<8x128xf32>
    %82 = arith.mulf %68, %81 : vector<8x128xf32>
    %cst_30 = arith.constant 0.000000e+00 : f32
    %83 = vector.broadcast %cst_30 : f32 to vector<8x128xf32>
    %84 = arith.subf %83, %75 : vector<8x128xf32>
    %85 = arith.mulf %84, %81 : vector<8x128xf32>
    %cst_31 = arith.constant 0.0981747731 : f32
    %86 = vector.broadcast %cst_31 : f32 to vector<8x128xf32>
    %87 = arith.mulf %85, %86 : vector<8x128xf32>
    %cst_32 = arith.constant 0.00586510263 : f32
    %88 = vector.broadcast %cst_32 : f32 to vector<8x128xf32>
    %89 = arith.mulf %81, %88 : vector<8x128xf32>
    %90 = arith.mulf %68, %89 : vector<8x128xf32>
    %91 = math.absf %82 : vector<8x128xf32>
    %92 = tpu.iota {dimensions = array<i32: 1>} : vector<8x128xi32>
    %93 = tpu.iota {dimensions = array<i32: 1>} : vector<8x4xi32>
    %c0_33 = arith.constant 0 : index
    %c0_34 = arith.constant 0 : index
    %94 = vector.load %arg5[%c0_33, %c0_34] : memref<8x4xf32, #tpu.memory_space<vmem>>, vector<8x4xf32>
    %cst_35 = arith.constant 0.000000e+00 : f32
    %95 = vector.broadcast %cst_35 : f32 to vector<8x128xf32>
    %cst_36 = arith.constant 0.000000e+00 : f32
    %96 = vector.broadcast %cst_36 : f32 to vector<8x128xf32>
    %cst_37 = arith.constant 0.000000e+00 : f32
    %97 = vector.broadcast %cst_37 : f32 to vector<8x4xf32>
    %c0_i32 = arith.constant 0 : i32
    %98 = vector.broadcast %c0_i32 : i32 to vector<8x128xi32>
    %99 = arith.cmpi sge, %92, %98 : vector<8x128xi32>
    %c32_i32 = arith.constant 32 : i32
    %100 = vector.broadcast %c32_i32 : i32 to vector<8x128xi32>
    %101 = arith.cmpi slt, %92, %100 : vector<8x128xi32>
    %102 = arith.andi %99, %101 : vector<8x128xi1>
    %cst_38 = arith.constant 0.000000e+00 : f32
    %103 = vector.broadcast %cst_38 : f32 to vector<8x128xf32>
    %104 = arith.select %102, %91, %103 : vector<8x128xi1>, vector<8x128xf32>
    %cst_39 = arith.constant dense<0.000000e+00> : vector<8xf32>
    %105 = vector.multi_reduction <add>, %104, %cst_39 [1] : vector<8x128xf32> to vector<8xf32>
    %106 = vector.shape_cast %105 : vector<8xf32> to vector<8x1xf32>
    %107 = vector.extract_strided_slice %94 {offsets = [0, 0], sizes = [8, 1], strides = [1, 1]} : vector<8x4xf32> to vector<8x1xf32>
    %108 = arith.mulf %106, %107 : vector<8x1xf32>
    %109 = tpu.reciprocal %108 : vector<8x1xf32> -> vector<8x1xf32>
    %cst_40 = arith.constant 8.000000e-01 : f32
    %110 = vector.broadcast %cst_40 : f32 to vector<8x1xf32>
    %111 = arith.mulf %110, %109 : vector<8x1xf32>
    %cst_41 = arith.constant 1.000000e+00 : f32
    %112 = vector.broadcast %cst_41 : f32 to vector<8x1xf32>
    %113 = arith.minimumf %112, %111 : vector<8x1xf32>
    %c0_i32_42 = arith.constant 0 : i32
    %114 = vector.broadcast %c0_i32_42 : i32 to vector<8x4xi32>
    %115 = arith.cmpi eq, %93, %114 : vector<8x4xi32>
    %116 = arith.mulf %108, %113 : vector<8x1xf32>
    %117 = vector.shape_cast %116 : vector<8x1xf32> to vector<8x1xf32>
    %118 = vector.broadcast %117 : vector<8x1xf32> to vector<8x4xf32>
    %119 = arith.select %115, %118, %97 : vector<8x4xi1>, vector<8x4xf32>
    %120 = arith.mulf %107, %113 : vector<8x1xf32>
    %121 = vector.shape_cast %120 : vector<8x1xf32> to vector<8x1xf32>
    %122 = vector.broadcast %121 : vector<8x1xf32> to vector<8x128xf32>
    %123 = arith.select %102, %122, %95 : vector<8x128xi1>, vector<8x128xf32>
    %124 = vector.shape_cast %107 : vector<8x1xf32> to vector<8x1xf32>
    %125 = vector.broadcast %124 : vector<8x1xf32> to vector<8x128xf32>
    %126 = arith.select %102, %125, %96 : vector<8x128xi1>, vector<8x128xf32>
    %c32_i32_43 = arith.constant 32 : i32
    %127 = vector.broadcast %c32_i32_43 : i32 to vector<8x128xi32>
    %128 = arith.cmpi sge, %92, %127 : vector<8x128xi32>
    %c64_i32 = arith.constant 64 : i32
    %129 = vector.broadcast %c64_i32 : i32 to vector<8x128xi32>
    %130 = arith.cmpi slt, %92, %129 : vector<8x128xi32>
    %131 = arith.andi %128, %130 : vector<8x128xi1>
    %cst_44 = arith.constant 0.000000e+00 : f32
    %132 = vector.broadcast %cst_44 : f32 to vector<8x128xf32>
    %133 = arith.select %131, %91, %132 : vector<8x128xi1>, vector<8x128xf32>
    %cst_45 = arith.constant dense<0.000000e+00> : vector<8xf32>
    %134 = vector.multi_reduction <add>, %133, %cst_45 [1] : vector<8x128xf32> to vector<8xf32>
    %135 = vector.shape_cast %134 : vector<8xf32> to vector<8x1xf32>
    %136 = vector.extract_strided_slice %94 {offsets = [0, 1], sizes = [8, 1], strides = [1, 1]} : vector<8x4xf32> to vector<8x1xf32>
    %137 = arith.mulf %135, %136 : vector<8x1xf32>
    %138 = tpu.reciprocal %137 : vector<8x1xf32> -> vector<8x1xf32>
    %cst_46 = arith.constant 8.000000e-01 : f32
    %139 = vector.broadcast %cst_46 : f32 to vector<8x1xf32>
    %140 = arith.mulf %139, %138 : vector<8x1xf32>
    %cst_47 = arith.constant 1.000000e+00 : f32
    %141 = vector.broadcast %cst_47 : f32 to vector<8x1xf32>
    %142 = arith.minimumf %141, %140 : vector<8x1xf32>
    %c1_i32_48 = arith.constant 1 : i32
    %143 = vector.broadcast %c1_i32_48 : i32 to vector<8x4xi32>
    %144 = arith.cmpi eq, %93, %143 : vector<8x4xi32>
    %145 = arith.mulf %137, %142 : vector<8x1xf32>
    %146 = vector.shape_cast %145 : vector<8x1xf32> to vector<8x1xf32>
    %147 = vector.broadcast %146 : vector<8x1xf32> to vector<8x4xf32>
    %148 = arith.select %144, %147, %119 : vector<8x4xi1>, vector<8x4xf32>
    %149 = arith.mulf %136, %142 : vector<8x1xf32>
    %150 = vector.shape_cast %149 : vector<8x1xf32> to vector<8x1xf32>
    %151 = vector.broadcast %150 : vector<8x1xf32> to vector<8x128xf32>
    %152 = arith.select %131, %151, %123 : vector<8x128xi1>, vector<8x128xf32>
    %153 = vector.shape_cast %136 : vector<8x1xf32> to vector<8x1xf32>
    %154 = vector.broadcast %153 : vector<8x1xf32> to vector<8x128xf32>
    %155 = arith.select %131, %154, %126 : vector<8x128xi1>, vector<8x128xf32>
    %c64_i32_49 = arith.constant 64 : i32
    %156 = vector.broadcast %c64_i32_49 : i32 to vector<8x128xi32>
    %157 = arith.cmpi sge, %92, %156 : vector<8x128xi32>
    %c96_i32 = arith.constant 96 : i32
    %158 = vector.broadcast %c96_i32 : i32 to vector<8x128xi32>
    %159 = arith.cmpi slt, %92, %158 : vector<8x128xi32>
    %160 = arith.andi %157, %159 : vector<8x128xi1>
    %cst_50 = arith.constant 0.000000e+00 : f32
    %161 = vector.broadcast %cst_50 : f32 to vector<8x128xf32>
    %162 = arith.select %160, %91, %161 : vector<8x128xi1>, vector<8x128xf32>
    %cst_51 = arith.constant dense<0.000000e+00> : vector<8xf32>
    %163 = vector.multi_reduction <add>, %162, %cst_51 [1] : vector<8x128xf32> to vector<8xf32>
    %164 = vector.shape_cast %163 : vector<8xf32> to vector<8x1xf32>
    %165 = vector.extract_strided_slice %94 {offsets = [0, 2], sizes = [8, 1], strides = [1, 1]} : vector<8x4xf32> to vector<8x1xf32>
    %166 = arith.mulf %164, %165 : vector<8x1xf32>
    %167 = tpu.reciprocal %166 : vector<8x1xf32> -> vector<8x1xf32>
    %cst_52 = arith.constant 8.000000e-01 : f32
    %168 = vector.broadcast %cst_52 : f32 to vector<8x1xf32>
    %169 = arith.mulf %168, %167 : vector<8x1xf32>
    %cst_53 = arith.constant 1.000000e+00 : f32
    %170 = vector.broadcast %cst_53 : f32 to vector<8x1xf32>
    %171 = arith.minimumf %170, %169 : vector<8x1xf32>
    %c2_i32_54 = arith.constant 2 : i32
    %172 = vector.broadcast %c2_i32_54 : i32 to vector<8x4xi32>
    %173 = arith.cmpi eq, %93, %172 : vector<8x4xi32>
    %174 = arith.mulf %166, %171 : vector<8x1xf32>
    %175 = vector.shape_cast %174 : vector<8x1xf32> to vector<8x1xf32>
    %176 = vector.broadcast %175 : vector<8x1xf32> to vector<8x4xf32>
    %177 = arith.select %173, %176, %148 : vector<8x4xi1>, vector<8x4xf32>
    %178 = arith.mulf %165, %171 : vector<8x1xf32>
    %179 = vector.shape_cast %178 : vector<8x1xf32> to vector<8x1xf32>
    %180 = vector.broadcast %179 : vector<8x1xf32> to vector<8x128xf32>
    %181 = arith.select %160, %180, %152 : vector<8x128xi1>, vector<8x128xf32>
    %182 = vector.shape_cast %165 : vector<8x1xf32> to vector<8x1xf32>
    %183 = vector.broadcast %182 : vector<8x1xf32> to vector<8x128xf32>
    %184 = arith.select %160, %183, %155 : vector<8x128xi1>, vector<8x128xf32>
    %c96_i32_55 = arith.constant 96 : i32
    %185 = vector.broadcast %c96_i32_55 : i32 to vector<8x128xi32>
    %186 = arith.cmpi sge, %92, %185 : vector<8x128xi32>
    %c128_i32 = arith.constant 128 : i32
    %187 = vector.broadcast %c128_i32 : i32 to vector<8x128xi32>
    %188 = arith.cmpi slt, %92, %187 : vector<8x128xi32>
    %189 = arith.andi %186, %188 : vector<8x128xi1>
    %cst_56 = arith.constant 0.000000e+00 : f32
    %190 = vector.broadcast %cst_56 : f32 to vector<8x128xf32>
    %191 = arith.select %189, %91, %190 : vector<8x128xi1>, vector<8x128xf32>
    %cst_57 = arith.constant dense<0.000000e+00> : vector<8xf32>
    %192 = vector.multi_reduction <add>, %191, %cst_57 [1] : vector<8x128xf32> to vector<8xf32>
    %193 = vector.shape_cast %192 : vector<8xf32> to vector<8x1xf32>
    %194 = vector.extract_strided_slice %94 {offsets = [0, 3], sizes = [8, 1], strides = [1, 1]} : vector<8x4xf32> to vector<8x1xf32>
    %195 = arith.mulf %193, %194 : vector<8x1xf32>
    %196 = tpu.reciprocal %195 : vector<8x1xf32> -> vector<8x1xf32>
    %cst_58 = arith.constant 8.000000e-01 : f32
    %197 = vector.broadcast %cst_58 : f32 to vector<8x1xf32>
    %198 = arith.mulf %197, %196 : vector<8x1xf32>
    %cst_59 = arith.constant 1.000000e+00 : f32
    %199 = vector.broadcast %cst_59 : f32 to vector<8x1xf32>
    %200 = arith.minimumf %199, %198 : vector<8x1xf32>
    %c3_i32_60 = arith.constant 3 : i32
    %201 = vector.broadcast %c3_i32_60 : i32 to vector<8x4xi32>
    %202 = arith.cmpi eq, %93, %201 : vector<8x4xi32>
    %203 = arith.mulf %195, %200 : vector<8x1xf32>
    %204 = vector.shape_cast %203 : vector<8x1xf32> to vector<8x1xf32>
    %205 = vector.broadcast %204 : vector<8x1xf32> to vector<8x4xf32>
    %206 = arith.select %202, %205, %177 : vector<8x4xi1>, vector<8x4xf32>
    %207 = arith.mulf %194, %200 : vector<8x1xf32>
    %208 = vector.shape_cast %207 : vector<8x1xf32> to vector<8x1xf32>
    %209 = vector.broadcast %208 : vector<8x1xf32> to vector<8x128xf32>
    %210 = arith.select %189, %209, %181 : vector<8x128xi1>, vector<8x128xf32>
    %211 = vector.shape_cast %194 : vector<8x1xf32> to vector<8x1xf32>
    %212 = vector.broadcast %211 : vector<8x1xf32> to vector<8x128xf32>
    %213 = arith.select %189, %212, %184 : vector<8x128xi1>, vector<8x128xf32>
    %214 = arith.mulf %82, %210 : vector<8x128xf32>
    %c0_61 = arith.constant 0 : index
    %c0_62 = arith.constant 0 : index
    %215 = vector.load %arg8[%c0_61, %c0_62] : memref<8x128xf32, #tpu.memory_space<vmem>>, vector<8x128xf32>
    tpu.vector_store %arg8[%c0_61, %c0_62], %214 {strides = array<i32>} : memref<8x128xf32, #tpu.memory_space<vmem>>, vector<8x128xf32>,
    %216 = arith.mulf %87, %213 : vector<8x128xf32>
    %c0_63 = arith.constant 0 : index
    %c0_64 = arith.constant 0 : index
    %217 = vector.load %arg9[%c0_63, %c0_64] : memref<8x128xf32, #tpu.memory_space<vmem>>, vector<8x128xf32>
    tpu.vector_store %arg9[%c0_63, %c0_64], %216 {strides = array<i32>} : memref<8x128xf32, #tpu.memory_space<vmem>>, vector<8x128xf32>,
    %218 = arith.mulf %90, %213 : vector<8x128xf32>
    %c0_65 = arith.constant 0 : index
    %c0_66 = arith.constant 0 : index
    %219 = vector.load %arg10[%c0_65, %c0_66] : memref<8x128xf32, #tpu.memory_space<vmem>>, vector<8x128xf32>
    tpu.vector_store %arg10[%c0_65, %c0_66], %218 {strides = array<i32>} : memref<8x128xf32, #tpu.memory_space<vmem>>, vector<8x128xf32>,
    %c0_67 = arith.constant 0 : index
    %c0_68 = arith.constant 0 : index
    %220 = vector.load %arg11[%c0_67, %c0_68] : memref<8x4xf32, #tpu.memory_space<vmem>>, vector<8x4xf32>
    tpu.vector_store %arg11[%c0_67, %c0_68], %206 {strides = array<i32>} : memref<8x4xf32, #tpu.memory_space<vmem>>, vector<8x4xf32>,
    return
  }
  func.func @transform_0(%arg0: i32) -> (i32, i32) {
    %c0_i32 = arith.constant 0 : i32
    %c0_i32_0 = arith.constant 0 : i32
    return %arg0, %c0_i32 : i32, i32
  }
  func.func @transform_1(%arg0: i32) -> (i32, i32) {
    %c0_i32 = arith.constant 0 : i32
    %c0_i32_0 = arith.constant 0 : i32
    return %arg0, %c0_i32 : i32, i32
  }
  func.func @transform_2(%arg0: i32) -> (i32, i32) {
    %c0_i32 = arith.constant 0 : i32
    %c0_i32_0 = arith.constant 0 : i32
    return %arg0, %c0_i32 : i32, i32
  }
  func.func @transform_3(%arg0: i32) -> (i32, i32) {
    %c0_i32 = arith.constant 0 : i32
    %c0_i32_0 = arith.constant 0 : i32
    return %arg0, %c0_i32 : i32, i32
  }
  func.func @transform_4(%arg0: i32) -> (i32, i32) {
    %c0_i32 = arith.constant 0 : i32
    %c0_i32_0 = arith.constant 0 : i32
    return %arg0, %c0_i32 : i32, i32
  }
  func.func @transform_5(%arg0: i32) -> (i32, i32) {
    %c0_i32 = arith.constant 0 : i32
    %c0_i32_0 = arith.constant 0 : i32
    return %arg0, %c0_i32 : i32, i32
  }
  func.func @transform_6(%arg0: i32) -> (i32, i32) {
    %c0_i32 = arith.constant 0 : i32
    %c0_i32_0 = arith.constant 0 : i32
    return %arg0, %c0_i32 : i32, i32
  }
  func.func @transform_7(%arg0: i32) -> (i32, i32) {
    %c0_i32 = arith.constant 0 : i32
    %c0_i32_0 = arith.constant 0 : i32
    return %arg0, %c0_i32 : i32, i32
  }
  func.func @transform_8(%arg0: i32) -> (i32, i32) {
    %c0_i32 = arith.constant 0 : i32
    %c0_i32_0 = arith.constant 0 : i32
    return %arg0, %c0_i32 : i32, i32
  }
  func.func @transform_9(%arg0: i32) -> (i32, i32) {
    %c0_i32 = arith.constant 0 : i32
    %c0_i32_0 = arith.constant 0 : i32
    return %arg0, %c0_i32 : i32, i32
  }
  func.func @transform_10(%arg0: i32) -> (i32, i32) {
    %c0_i32 = arith.constant 0 : i32
    %c0_i32_0 = arith.constant 0 : i32
    return %arg0, %c0_i32 : i32, i32
  }
}

</mosaic_0001>

<llo_original>
// kernel: biological_phase_cell_forward.1
$region0: #{biological_phase_cell_forward.1}
  #allocation0 [shape = 'u32[]', space=smem, size = 0x4, offset = 0x4, fixed_abs, tag = 'smem constant byte address 0x4 - core index']
  #allocation1 [shape = 'u32[72,128]{1,0:T(1,128)}', space=vmem, size = 0x9000, scoped, tag = 'internal scratch']
  %s0 = inlined_call_operand.vmem [shape: s32[8,128], index: 0, kind: input, shape index: {}]
  %s1 = inlined_call_operand.vmem [shape: s32[8,128], index: 1, kind: input, shape index: {}]
  %s2 = inlined_call_operand.vmem [shape: s32[8,128], index: 2, kind: input, shape index: {}]
  %s3 = inlined_call_operand.vmem [shape: s32[8,128], index: 3, kind: input, shape index: {}]
  %s4 = inlined_call_operand.vmem [shape: f32[8,4], index: 4, kind: input, shape index: {}]
  %s5 = inlined_call_operand.vmem [shape: s32[8,128], index: 5, kind: output, shape index: {0}]
  %s6 = inlined_call_operand.vmem [shape: s32[8,128], index: 6, kind: output, shape index: {1}]
  %s7 = inlined_call_operand.vmem [shape: f32[8,128], index: 7, kind: output, shape index: {2}]
  %s8 = inlined_call_operand.vmem [shape: f32[8,128], index: 8, kind: output, shape index: {3}]
  %s9 = inlined_call_operand.vmem [shape: f32[8,128], index: 9, kind: output, shape index: {4}]
  %s10 = inlined_call_operand.vmem [shape: f32[8,4], index: 10, kind: output, shape index: {5}]
  %11 = xla_tuple %s5, %s6, %s7, %s8, %s9, %s10
  %s12 = sld [smem:[#allocation0]]
  $region70: #{biological_phase_cell_forward.1} parent=0
    _
  %s14 = ssub.s32 1, %s12
  %s15 = scalar_select 0, %s14, %s12
  // Predicated region
  $region2: #{biological_phase_cell_forward.1} parent=0 // pred_check
    _
  $region3: #{biological_phase_cell_forward.1} parent=0 // pred_check_branch
    %17 = sbr.rel (0) target = $region5
  $region4: #{biological_phase_cell_forward.1} parent=0 // pred_region
    _
  $region5: #{biological_phase_cell_forward.1} parent=0 // pred_fallthru
    _
  // Predicated region
  $region6: #{biological_phase_cell_forward.1} parent=0 // pred_check
    _
  $region7: #{biological_phase_cell_forward.1} parent=0 // pred_check_branch
    %19 = sbr.rel (0) target = $region9
  $region8: #{biological_phase_cell_forward.1} parent=0 // pred_region
    _
  $region9: #{biological_phase_cell_forward.1} parent=0 // pred_fallthru
    _
  // Predicated region
  $region10: #{biological_phase_cell_forward.1} parent=0 // pred_check
    _
  $region11: #{biological_phase_cell_forward.1} parent=0 // pred_check_branch
    %21 = sbr.rel (0) target = $region13
  $region12: #{biological_phase_cell_forward.1} parent=0 // pred_region
    _
  $region13: #{biological_phase_cell_forward.1} parent=0 // pred_fallthru
    _
  // Predicated region
  $region14: #{biological_phase_cell_forward.1} parent=0 // pred_check
    _
  $region15: #{biological_phase_cell_forward.1} parent=0 // pred_check_branch
    %23 = sbr.rel (0) target = $region17
  $region16: #{biological_phase_cell_forward.1} parent=0 // pred_region
    _
  $region17: #{biological_phase_cell_forward.1} parent=0 // pred_fallthru
    _
  // Predicated region
  $region18: #{biological_phase_cell_forward.1} parent=0 // pred_check
    _
  $region19: #{biological_phase_cell_forward.1} parent=0 // pred_check_branch
    %25 = sbr.rel (0) target = $region21
  $region20: #{biological_phase_cell_forward.1} parent=0 // pred_region
    _
  $region21: #{biological_phase_cell_forward.1} parent=0 // pred_fallthru
    _
  %v26 = vld [vmem:[%s0] sm:$0xff]
  %v27 = vld [vmem:[%s2] sm:$0xff]
  %v28 = vadd.s32 %v26, %v27
  %v29 = vand.u32 %v28, 63
  %v30 = vld [vmem:[%s1] sm:$0xff]
  %v31 = vld [vmem:[%s3] sm:$0xff]
  %v32 = vadd.s32 %v30, %v31
  %v33 = vand.u32 %v32, 1023
  %34 = vst [vmem:[%s5] sm:$0xff] %v29
  %35 = vst [vmem:[%s6] sm:$0xff] %v33
  %v36 = vshra.s32 %v29, 4
  %v37 = vand.u32 %v29, 15
  %v38 = vcvt.s32.f32 %v37
  %v39 = vmul.f32 %v38, 0.09817477
  %v40 = vmul.f32 %v39, %v39
  %v41 = vmul.f32 %v40, 2.0876756e-09
  %v42 = vadd.f32 %v41, -2.755732e-07
  %v43 = vmul.f32 %v40, %v42
  %v44 = vadd.f32 %v43, 2.4801588e-05
  %v45 = vmul.f32 %v40, %v44
  %v46 = vadd.f32 %v45, -0.0013888889
  %v47 = vmul.f32 %v40, %v46
  %v48 = vadd.f32 %v47, 0.041666668
  %v49 = vmul.f32 %v40, %v48
  %v50 = vadd.f32 %v49, -0.5
  %v51 = vmul.f32 %v40, %v50
  %v52 = vadd.f32 %v51, 1.0
  %v53 = vmul.f32 %v40, -2.5052108e-08
  %v54 = vadd.f32 %v53, 2.7557319e-06
  %v55 = vmul.f32 %v40, %v54
  %v56 = vadd.f32 %v55, -0.0001984127
  %v57 = vmul.f32 %v40, %v56
  %v58 = vadd.f32 %v57, 0.008333334
  %v59 = vmul.f32 %v40, %v58
  %v60 = vadd.f32 %v59, -0.16666667
  %v61 = vmul.f32 %v40, %v60
  %v62 = vadd.f32 %v61, 1.0
  %v63 = vmul.f32 %v39, %v62
  %vm64 = vcmp.eq.s32.totalorder %v36, 1
  %vm65 = vcmp.eq.s32.totalorder %v36, 2
  %vm66 = vcmp.eq.s32.totalorder %v36, 3
  %v67 = vsub.f32 0.0, %v63
  %v68 = vsub.f32 0.0, %v52
  %v69 = vsel %vm66, %v63, %v52
  %v70 = vsel %vm65, %v68, %v69
  %v71 = vsel %vm64, %v67, %v70
  %v72 = vsel %vm66, %v68, %v63
  %v73 = vsel %vm65, %v67, %v72
  %v74 = vsel %vm64, %v52, %v73
  %v75 = vcvt.s32.f32 %v33
  %v76 = vmul.f32 %v75, 0.0058651026
  %v77 = vadd.f32 %v76, -3.0
  %v78 = vmul.f32 %v77, 1.442695
  %v79 = vpow.pop %v78
  %v80 = vmul.f32 %v71, %v79
  %v81 = vsub.f32 0.0, %v74
  %v82 = vmul.f32 %v81, %v79
  %v83 = vmul.f32 %v82, 0.09817477
  %v84 = vmul.f32 %v79, 0.0058651026
  %v85 = vmul.f32 %v71, %v84
  %v86 = vand.u32 2147483647, %v80
  %v87 = vlaneseq
  %v88 = vand.u32 %v87, 127
  %v89 = vld [vmem:[%s4] sm:$0xff]
  %vm90 = vcmp.ge.s32.totalorder %v88, 0
  %vm91 = vcmp.lt.s32.totalorder %v88, 32
  %vm92 = vmand %vm90, %vm91
  %v93 = vsel %vm92, %v86, 0.0
  %94 = vadd.xlane.f32.xlu0 %v93
  %v95 = vpop.xlane.xlu0 %94
  %v96 = vmul.f32 %v95, %v89
  %v97 = vrcp.pop %v96
  %v98 = vmul.f32 %v96, %v97
  %v99 = vsub.f32 1.0, %v98
  %v100 = vmul.f32 %v97, %v99
  %v101 = vadd.f32 %v97, %v100
  %vm102 = vweird.f32 %v96
  %vm103 = vweird.f32 %v97
  %vm104 = vmor %vm102, %vm103
  %v105 = vsel %vm104, %v97, %v101
  %v106 = vand.u32 2147483647, %v96
  %vm107 = vcmp.eq.f32.partialorder %v106, 8.507059e+37
  %v108 = vand.u32 %v96, 2147483648
  %v109 = vor.u32 1.1754944e-38, %v108
  %v110 = vsel %vm107, %v109, %v105
  %v111 = vmul.f32 %v110, 0.8
  %v112 = vmin.f32 %v111, 1.0
  %vm113 = vcmp.eq.s32.totalorder %v88, 0
  %v114 = vmul.f32 %v96, %v112
  %116 = vset.pattern.permute.xlu0 0
  %117 = vperm.xlu0 %116, %v114
  %v118 = vpop.permute.xlu0 %117
  %v120 = vsel %vm113, %v118, 0.0
  %v121 = vmul.f32 %v89, %v112
  %123 = vset.pattern.permute.xlu0 0
  %124 = vperm.xlu0 %123, %v121
  %v125 = vpop.permute.xlu0 %124
  %v127 = vsel %vm92, %v125, 0.0
  %129 = vset.pattern.permute.xlu0 0
  %130 = vperm.xlu0 %129, %v89
  %v131 = vpop.permute.xlu0 %130
  %v133 = vsel %vm92, %v131, 0.0
  %vm134 = vcmp.ge.s32.totalorder %v88, 32
  %vm135 = vcmp.lt.s32.totalorder %v88, 64
  %vm136 = vmand %vm134, %vm135
  %v137 = vsel %vm136, %v86, 0.0
  %138 = vadd.xlane.f32.xlu0 %v137
  %v139 = vpop.xlane.xlu0 %138
  %v140 = vmul.f32 %v139, %v89
  %v141 = vrcp.pop %v140
  %v142 = vmul.f32 %v140, %v141
  %v143 = vsub.f32 1.0, %v142
  %v144 = vmul.f32 %v141, %v143
  %v145 = vadd.f32 %v141, %v144
  %vm146 = vweird.f32 %v140
  %vm147 = vweird.f32 %v141
  %vm148 = vmor %vm146, %vm147
  %v149 = vsel %vm148, %v141, %v145
  %v150 = vand.u32 2147483647, %v140
  %vm151 = vcmp.eq.f32.partialorder %v150, 8.507059e+37
  %v152 = vand.u32 %v140, 2147483648
  %v153 = vor.u32 1.1754944e-38, %v152
  %v154 = vsel %vm151, %v153, %v149
  %v155 = vmul.f32 %v154, 0.8
  %v156 = vmin.f32 %v155, 1.0
  %vm157 = vcmp.eq.s32.totalorder %v88, 1
  %v158 = vmul.f32 %v140, %v156
  %160 = vset.pattern.permute.xlu0 1
  %161 = vperm.xlu0 %160, %v158
  %v162 = vpop.permute.xlu0 %161
  %v164 = vsel %vm157, %v162, %v120
  %v165 = vmul.f32 %v89, %v156
  %167 = vset.pattern.permute.xlu0 1
  %168 = vperm.xlu0 %167, %v165
  %v169 = vpop.permute.xlu0 %168
  %v171 = vsel %vm136, %v169, %v127
  %172 = vset.pattern.permute.xlu0 1
  %173 = vperm.xlu0 %172, %v89
  %v174 = vpop.permute.xlu0 %173
  %v176 = vsel %vm136, %v174, %v133
  %vm177 = vcmp.ge.s32.totalorder %v88, 64
  %vm178 = vcmp.lt.s32.totalorder %v88, 96
  %vm179 = vmand %vm177, %vm178
  %v180 = vsel %vm179, %v86, 0.0
  %181 = vadd.xlane.f32.xlu0 %v180
  %v182 = vpop.xlane.xlu0 %181
  %v183 = vmul.f32 %v182, %v89
  %v184 = vrcp.pop %v183
  %v185 = vmul.f32 %v183, %v184
  %v186 = vsub.f32 1.0, %v185
  %v187 = vmul.f32 %v184, %v186
  %v188 = vadd.f32 %v184, %v187
  %vm189 = vweird.f32 %v183
  %vm190 = vweird.f32 %v184
  %vm191 = vmor %vm189, %vm190
  %v192 = vsel %vm191, %v184, %v188
  %v193 = vand.u32 2147483647, %v183
  %vm194 = vcmp.eq.f32.partialorder %v193, 8.507059e+37
  %v195 = vand.u32 %v183, 2147483648
  %v196 = vor.u32 1.1754944e-38, %v195
  %v197 = vsel %vm194, %v196, %v192
  %v198 = vmul.f32 %v197, 0.8
  %v199 = vmin.f32 %v198, 1.0
  %vm200 = vcmp.eq.s32.totalorder %v88, 2
  %v201 = vmul.f32 %v183, %v199
  %203 = vset.pattern.permute.xlu0 2
  %204 = vperm.xlu0 %203, %v201
  %v205 = vpop.permute.xlu0 %204
  %v207 = vsel %vm200, %v205, %v164
  %v208 = vmul.f32 %v89, %v199
  %210 = vset.pattern.permute.xlu0 2
  %211 = vperm.xlu0 %210, %v208
  %v212 = vpop.permute.xlu0 %211
  %v214 = vsel %vm179, %v212, %v171
  %215 = vset.pattern.permute.xlu0 2
  %216 = vperm.xlu0 %215, %v89
  %v217 = vpop.permute.xlu0 %216
  %v219 = vsel %vm179, %v217, %v176
  %vm220 = vcmp.ge.s32.totalorder %v88, 96
  %vm221 = vcmp.lt.s32.totalorder %v88, 128
  %vm222 = vmand %vm220, %vm221
  %v223 = vsel %vm222, %v86, 0.0
  %224 = vadd.xlane.f32.xlu0 %v223
  %v225 = vpop.xlane.xlu0 %224
  %v226 = vmul.f32 %v225, %v89
  %v227 = vrcp.pop %v226
  %v228 = vmul.f32 %v226, %v227
  %v229 = vsub.f32 1.0, %v228
  %v230 = vmul.f32 %v227, %v229
  %v231 = vadd.f32 %v227, %v230
  %vm232 = vweird.f32 %v226
  %vm233 = vweird.f32 %v227
  %vm234 = vmor %vm232, %vm233
  %v235 = vsel %vm234, %v227, %v231
  %v236 = vand.u32 2147483647, %v226
  %vm237 = vcmp.eq.f32.partialorder %v236, 8.507059e+37
  %v238 = vand.u32 %v226, 2147483648
  %v239 = vor.u32 1.1754944e-38, %v238
  %v240 = vsel %vm237, %v239, %v235
  %v241 = vmul.f32 %v240, 0.8
  %v242 = vmin.f32 %v241, 1.0
  %vm243 = vcmp.eq.s32.totalorder %v88, 3
  %v244 = vmul.f32 %v226, %v242
  %246 = vset.pattern.permute.xlu0 3
  %247 = vperm.xlu0 %246, %v244
  %v248 = vpop.permute.xlu0 %247
  %v250 = vsel %vm243, %v248, %v207
  %v251 = vmul.f32 %v89, %v242
  %253 = vset.pattern.permute.xlu0 3
  %254 = vperm.xlu0 %253, %v251
  %v255 = vpop.permute.xlu0 %254
  %v257 = vsel %vm222, %v255, %v214
  %258 = vset.pattern.permute.xlu0 3
  %259 = vperm.xlu0 %258, %v89
  %v260 = vpop.permute.xlu0 %259
  %v262 = vsel %vm222, %v260, %v219
  %v263 = vmul.f32 %v80, %v257
  %264 = vst [vmem:[%s7] sm:$0xff] %v263
  %v265 = vmul.f32 %v83, %v262
  %266 = vst [vmem:[%s8] sm:$0xff] %v265
  %v267 = vmul.f32 %v85, %v262
  %268 = vst [vmem:[%s9] sm:$0xff] %v267
  %vm269 = vcmask 31744
  %270 = vst.msk [vmem:[%s10] sm:$0xff] %vm269, %v250
  // Predicated region
  $region22: #{biological_phase_cell_forward.1} parent=0 // pred_check
    _
  $region23: #{biological_phase_cell_forward.1} parent=0 // pred_check_branch
    %272 = sbr.rel (0) target = $region25
  $region24: #{biological_phase_cell_forward.1} parent=0 // pred_region
    _
  $region25: #{biological_phase_cell_forward.1} parent=0 // pred_fallthru
    _
  // Predicated region
  $region26: #{biological_phase_cell_forward.1} parent=0 // pred_check
    _
  $region27: #{biological_phase_cell_forward.1} parent=0 // pred_check_branch
    %274 = sbr.rel (0) target = $region29
  $region28: #{biological_phase_cell_forward.1} parent=0 // pred_region
    _
  $region29: #{biological_phase_cell_forward.1} parent=0 // pred_fallthru
    _
  // Predicated region
  $region30: #{biological_phase_cell_forward.1} parent=0 // pred_check
    _
  $region31: #{biological_phase_cell_forward.1} parent=0 // pred_check_branch
    %276 = sbr.rel (0) target = $region33
  $region32: #{biological_phase_cell_forward.1} parent=0 // pred_region
    _
  $region33: #{biological_phase_cell_forward.1} parent=0 // pred_fallthru
    _
  // Predicated region
  $region34: #{biological_phase_cell_forward.1} parent=0 // pred_check
    _
  $region35: #{biological_phase_cell_forward.1} parent=0 // pred_check_branch
    %278 = sbr.rel (0) target = $region37
  $region36: #{biological_phase_cell_forward.1} parent=0 // pred_region
    _
  $region37: #{biological_phase_cell_forward.1} parent=0 // pred_fallthru
    _
  // Predicated region
  $region38: #{biological_phase_cell_forward.1} parent=0 // pred_check
    _
  $region39: #{biological_phase_cell_forward.1} parent=0 // pred_check_branch
    %280 = sbr.rel (0) target = $region41
  $region40: #{biological_phase_cell_forward.1} parent=0 // pred_region
    _
  $region41: #{biological_phase_cell_forward.1} parent=0 // pred_fallthru
    _
  // Predicated region
  $region42: #{biological_phase_cell_forward.1} parent=0 // pred_check
    _
  $region43: #{biological_phase_cell_forward.1} parent=0 // pred_check_branch
    %282 = sbr.rel (0) target = $region45
  $region44: #{biological_phase_cell_forward.1} parent=0 // pred_region
    _
  $region45: #{biological_phase_cell_forward.1} parent=0 // pred_fallthru
    _
  // Predicated region
  $region46: #{biological_phase_cell_forward.1} parent=0 // pred_check
    _
  $region47: #{biological_phase_cell_forward.1} parent=0 // pred_check_branch
    %284 = sbr.rel (0) target = $region49
  $region48: #{biological_phase_cell_forward.1} parent=0 // pred_region
    _
  $region49: #{biological_phase_cell_forward.1} parent=0 // pred_fallthru
    _
  // Predicated region
  $region50: #{biological_phase_cell_forward.1} parent=0 // pred_check
    _
  $region51: #{biological_phase_cell_forward.1} parent=0 // pred_check_branch
    %286 = sbr.rel (0) target = $region53
  $region52: #{biological_phase_cell_forward.1} parent=0 // pred_region
    _
  $region53: #{biological_phase_cell_forward.1} parent=0 // pred_fallthru
    _
  // Predicated region
  $region54: #{biological_phase_cell_forward.1} parent=0 // pred_check
    _
  $region55: #{biological_phase_cell_forward.1} parent=0 // pred_check_branch
    %288 = sbr.rel (0) target = $region57
  $region56: #{biological_phase_cell_forward.1} parent=0 // pred_region
    _
  $region57: #{biological_phase_cell_forward.1} parent=0 // pred_fallthru
    _
  // Predicated region
  $region58: #{biological_phase_cell_forward.1} parent=0 // pred_check
    _
  $region59: #{biological_phase_cell_forward.1} parent=0 // pred_check_branch
    %290 = sbr.rel (0) target = $region61
  $region60: #{biological_phase_cell_forward.1} parent=0 // pred_region
    _
  $region61: #{biological_phase_cell_forward.1} parent=0 // pred_fallthru
    _
  // Predicated region
  $region62: #{biological_phase_cell_forward.1} parent=0 // pred_check
    _
  $region63: #{biological_phase_cell_forward.1} parent=0 // pred_check_branch
    %292 = sbr.rel (0) target = $region65
  $region64: #{biological_phase_cell_forward.1} parent=0 // pred_region
    _
  $region65: #{biological_phase_cell_forward.1} parent=0 // pred_fallthru
    _
  // Predicated region
  $region66: #{biological_phase_cell_forward.1} parent=0 // pred_check
    _
  $region67: #{biological_phase_cell_forward.1} parent=0 // pred_check_branch
    %294 = sbr.rel (0) target = $region69
  $region68: #{biological_phase_cell_forward.1} parent=0 // pred_region
    _
  $region69: #{biological_phase_cell_forward.1} parent=0 // pred_fallthru
    _

</llo_original>
